<compile_context>
chip_gen: v7x
topology: tpu7x:2x2x1
jax: 0.10.0
libtpu: 0.0.40
codegen_flags: <defaults>
</compile_context>

<pallas_src>
import jax
import jax.numpy as jnp
from jax.experimental import pallas as pl
from jax.experimental.pallas import tpu as pltpu


def _round_up(v, m):
    return (v + m - 1) // m * m


# ----------------------------------------------------------------------------
# Fused kernel: adjacency prep + all GCN layers, one batch block per grid step.
# ----------------------------------------------------------------------------
def _make_fused_gcn_kernel(num_layers, mask_rank2):
    def kernel(adj_ref, x_ref, *rest):
        # rest = (w0, b0, w1, b1, ..., out_ref, mask_ref)
        w_refs = rest[0:2 * num_layers:2]
        b_refs = rest[1:2 * num_layers:2]
        out_ref = rest[2 * num_layers]
        mask_ref = rest[2 * num_layers + 1]

        # Binarize the narrow-dtype adjacency once per batch block.
        adjm = (adj_ref[...] != 0).astype(jnp.float32)        # [Bb, Np, Np]

        row_sum = jnp.sum(adjm, axis=2)                       # [Bb, Np] lane reduce
        col_sum = jnp.sum(adjm, axis=1)                       # [Bb, Np] sublane reduce

        mask_val = (row_sum + col_sum == 0.0).astype(jnp.float32)
        if mask_rank2:
            mask_ref[...] = mask_val                          # [Bb, Np]
        else:
            mask_ref[...] = mask_val[:, None, :]              # [Bb, 1, Np]

        x = x_ref[...].astype(jnp.float32)                    # [Bb, Np, Dinp]
        bb, n, _ = x.shape
        mp = w_refs[0].shape[1]                               # shared (padded) out dim

        # Exact reciprocal (NOT approx=True: must hold 1e-5 tolerance),
        # broadcast once outside the loop and reused by every layer.
        inv_denom = jnp.broadcast_to(
            (1.0 / (row_sum + 1.0))[:, :, None], (bb, n, mp))

        for l in range(num_layers):                           # static, small
            w = w_refs[l][...]                                # [Dl, Mp]
            b2 = 2.0 * b_refs[l][...]                         # [1, Mp]  (bias fold)
            dl, dout = w.shape
            if dout <= dl:
                # A(xW) + xW: the O(N^2) matmul contracts over the smaller
                # output dim, and no (A + I) temp is ever materialized.
                xw = jnp.dot(x.reshape(bb * n, dl), w,
                             preferred_element_type=jnp.float32
                             ).reshape(bb, n, dout)
                axw = jnp.einsum("bij,bjd->bid", adjm, xw,
                                 preferred_element_type=jnp.float32)
                h = axw + xw + b2[None, :, :]
            else:
                # (Ax + x) W: cheaper when the layer expands features.
                ax = jnp.einsum("bij,bjd->bid", adjm, x,
                                preferred_element_type=jnp.float32)
                h = jnp.dot((ax + x).reshape(bb * n, dl), w,
                            preferred_element_type=jnp.float32
                            ).reshape(bb, n, dout) + b2[None, :, :]
            x = jnp.maximum(h * inv_denom, 0.0)               # /denom + ReLU
        out_ref[...] = x.astype(out_ref.dtype)

    return kernel


def _pick_block_b(B, Np, Dinp, Mp, adj_itemsize, num_layers, budget_bytes):
    """Largest batch block fitting the VMEM budget, preferring >=2 grid steps
    (v7x megacore) — larger blocks also amortize per-step overhead (v5e/v6e)."""
    divisors = [d for d in range(1, B + 1) if B % d == 0]

    def vmem_est(bb):
        adj_blk = 2 * bb * Np * Np * adj_itemsize             # double-buffered in
        x_blk = 2 * bb * Np * Dinp * 4
        out_blk = 2 * bb * Np * Mp * 4
        mask_blk = 2 * bb * Np * 4
        w_blk = 2 * 4 * sum((Dinp if l == 0 else Mp) * Mp + Mp
                            for l in range(num_layers))
        temps = bb * Np * Np * 4 + 3 * bb * Np * max(Dinp, Mp) * 4
        return adj_blk + x_blk + out_blk + mask_blk + w_blk + temps

    fitting = [d for d in divisors if vmem_est(d) <= budget_bytes] or [1]
    pool = [d for d in fitting if B // d >= 2] or fitting
    return max(pool)


# ----------------------------------------------------------------------------
# Wrapper: adjacency prep + all layers in one pallas_call (grid over batch).
# ----------------------------------------------------------------------------
def gcn_fused(adj, x, weights, biases, *, block_b=None,
              vmem_limit_bytes=48 * 1024 * 1024):
    """adj: [B,N,N] any numeric dtype, x: [B,N,Din] f32.
    Returns (out [B,N,mem_dim] f32, mask [B,N] f32 in {0,1})."""
    B, N, _ = adj.shape
    Din = x.shape[-1]
    M = weights[-1].shape[1]
    L = len(weights)
    assert weights[0].shape[0] == Din and all(w.shape[1] == M for w in weights)

    # Narrow the dominant HBM stream: the kernel only needs (adj != 0), so a
    # wide float/int adjacency is binarized to int8 (4x less DMA per block).
    if adj.dtype.itemsize > 1:
        adj = (adj != 0).astype(jnp.int8)

    # Pad to TPU-friendly tiles: N to a sublane multiple (keeps the in-kernel
    # [Bb*N, D] reshape a free sublane merge), feature dims to 128 lanes
    # (lane-dense loads/stores, full MXU tiles).  Zero padding is sliced off
    # after the call and cannot affect the sums or matmuls.
    Np = _round_up(N, 8)
    Dinp = _round_up(Din, 128)
    Mp = _round_up(M, 128)

    adj_p = adj if Np == N else jnp.pad(adj, ((0, 0), (0, Np - N), (0, Np - N)))
    x_p = x if (Np == N and Dinp == Din) else jnp.pad(
        x, ((0, 0), (0, Np - N), (0, Dinp - Din)))

    if block_b is None:
        block_b = _pick_block_b(B, Np, Dinp, Mp, adj_p.dtype.itemsize, L,
                                budget_bytes=int(vmem_limit_bytes * 0.75))
    assert B % block_b == 0
    grid = (B // block_b,)

    # Sublane-dense 2D mask output whenever the block satisfies the (8,·) rule.
    mask_rank2 = (block_b % 8 == 0) or (block_b == B)

    in_specs = [
        pl.BlockSpec((block_b, Np, Np), lambda g: (g, 0, 0)),
        pl.BlockSpec((block_b, Np, Dinp), lambda g: (g, 0, 0)),
    ]
    args = [adj_p, x_p]
    for l, (w, b) in enumerate(zip(weights, biases)):
        din_l = Dinp if l == 0 else Mp
        w_pad = jnp.pad(w, ((0, din_l - w.shape[0]), (0, Mp - w.shape[1])))
        b_pad = jnp.pad(b.reshape(1, -1), ((0, 0), (0, Mp - b.shape[0])))
        # Constant index_map; the second pipeline buffer is a few hundred KiB
        # of wasted VMEM at most — left double-buffered for compile safety.
        in_specs.append(pl.BlockSpec(w_pad.shape, lambda g: (0, 0)))
        in_specs.append(pl.BlockSpec(b_pad.shape, lambda g: (0, 0)))
        args.append(w_pad)
        args.append(b_pad)

    if mask_rank2:
        mask_shape = jax.ShapeDtypeStruct((B, Np), jnp.float32)
        mask_spec = pl.BlockSpec((block_b, Np), lambda g: (g, 0))
    else:
        mask_shape = jax.ShapeDtypeStruct((B, 1, Np), jnp.float32)
        mask_spec = pl.BlockSpec((block_b, 1, Np), lambda g: (g, 0, 0))

    out_p, mask_p = pl.pallas_call(
        _make_fused_gcn_kernel(L, mask_rank2),
        out_shape=(jax.ShapeDtypeStruct((B, Np, Mp), jnp.float32), mask_shape),
        grid=grid,
        in_specs=in_specs,
        out_specs=(pl.BlockSpec((block_b, Np, Mp), lambda g: (g, 0, 0)),
                   mask_spec),
        compiler_params=pltpu.CompilerParams(
            dimension_semantics=("parallel",),
            vmem_limit_bytes=vmem_limit_bytes),
    )(*args)

    out = out_p[:, :N, :M]
    mask2d = mask_p[:, :N] if mask_rank2 else mask_p[:, 0, :N]
    return out, mask2d


# ----------------------------------------------------------------------------
# Full GCN forward (embedding lookups & param plumbing in plain JAX).
# ----------------------------------------------------------------------------
def gcn_forward(adj, words, pos, emb_table, pos_table, weights, biases):
    # Embedding lookups (glue; dropout layers are identity in eval mode).
    word_embs = jnp.take(emb_table, words, axis=0)            # [B, N, emb_dim]
    pos_embs = jnp.take(pos_table, pos, axis=0)               # [B, N, pos_dim]
    x = jnp.concatenate([word_embs, pos_embs], axis=2).astype(jnp.float32)

    out, mask2d = gcn_fused(adj, x, weights, biases)
    mask = mask2d[..., None].astype(bool)                     # [B, N, 1] bool
    return out, mask


# Pure-JAX reference for correctness checking.
def gcn_forward_ref(adj, words, pos, emb_table, pos_table, weights, biases):
    word_embs = jnp.take(emb_table, words, axis=0)
    pos_embs = jnp.take(pos_table, pos, axis=0)
    x = jnp.concatenate([word_embs, pos_embs], axis=2).astype(jnp.float32)
    adjm = jnp.where(adj != 0, 1.0, 0.0).astype(jnp.float32)
    denom = adjm.sum(2)[..., None] + 1.0
    mask = ((adjm.sum(2) + adjm.sum(1)) == 0)[..., None]
    for w, b in zip(weights, biases):
        ax = jnp.einsum("bij,bjd->bid", adjm, x)
        axw = ax @ w + b[None, None, :] + x @ w + b[None, None, :]
        x = jax.nn.relu(axw / denom)
    return x, mask


if __name__ == "__main__":
    # Small deterministic config.
    B, N = 2, 8
    vocab, pos_vocab = 50, 10
    emb_dim, pos_dim = 24, 8
    in_dim = emb_dim + pos_dim      # 32
    mem_dim = 32
    num_layers = 2

    key = jax.random.PRNGKey(0)
    k_emb, k_pos, k_adj, k_words, k_ptags, k_w = jax.random.split(key, 6)

    emb_table = 0.1 * jax.random.normal(k_emb, (vocab, emb_dim), jnp.float32)
    pos_table = 0.1 * jax.random.normal(k_pos, (pos_vocab, pos_dim), jnp.float32)

    # Deterministic Linear params: weight stored as [in, out] (== W^T of torch).
    weights, biases = [], []
    wkeys = jax.random.split(k_w, 2 * num_layers)
    for l in range(num_layers):
        din = in_dim if l == 0 else mem_dim
        weights.append(0.1 * jax.random.normal(wkeys[2 * l], (din, mem_dim), jnp.float32))
        biases.append(0.1 * jax.random.normal(wkeys[2 * l + 1], (mem_dim,), jnp.float32))

    # Inputs: sparse-ish integer adjacency (float dtype, values in {0,1,2}),
    # token ids, pos-tag ids.  (masks/deprel/head/subj_pos/obj_pos are unused
    # on the 'regular' adj_type / eval path.)
    adj_raw = jax.random.randint(k_adj, (B, N, N), 0, 5)
    adj = jnp.where(adj_raw >= 3, (adj_raw - 2), 0).astype(jnp.float32)
    words = jax.random.randint(k_words, (B, N), 0, vocab)
    pos = jax.random.randint(k_ptags, (B, N), 0, pos_vocab)

    out, mask = gcn_forward(adj, words, pos, emb_table, pos_table, weights, biases)
    out = jax.block_until_ready(out)
    mask = jax.block_until_ready(mask)

    ref_out, ref_mask = gcn_forward_ref(adj, words, pos, emb_table, pos_table,
                                        weights, biases)
    assert out.shape == (B, N, mem_dim) and mask.shape == (B, N, 1)
    assert jnp.allclose(out, ref_out, atol=1e-5, rtol=1e-5)
    assert bool(jnp.all(mask == ref_mask))

    # TODO(synk): rnn / diagonal_deprel / full_deprel / concat_deprel branches
    # and train-time dropouts are not exercised here (eval 'regular' path only).
    print("KERNEL_OK")
</pallas_src>

<mosaic_0001>
module attributes {stable_mosaic.version = 11 : i64} {
  func.func @kernel(%arg0: i32, %arg1: memref<1x8x8xi8, #tpu.memory_space<vmem>>, %arg2: memref<1x8x128xf32, #tpu.memory_space<vmem>>, %arg3: memref<128x128xf32, #tpu.memory_space<vmem>>, %arg4: memref<1x128xf32, #tpu.memory_space<vmem>>, %arg5: memref<128x128xf32, #tpu.memory_space<vmem>>, %arg6: memref<1x128xf32, #tpu.memory_space<vmem>>, %arg7: memref<1x8x128xf32, #tpu.memory_space<vmem>>, %arg8: memref<1x1x8xf32, #tpu.memory_space<vmem>>) attributes {dimension_semantics = [#tpu.dimension_semantics<parallel>], iteration_bounds = array<i64: 2>, scalar_prefetch = 0 : i64, scratch_operands = 0 : i64, tpu.core_type = #tpu.core_type<tc>, window_params = [{transform_indices = @transform_0, window_bounds = array<i64: 1, 8, 8>}, {transform_indices = @transform_1, window_bounds = array<i64: 1, 8, 128>}, {pipeline_mode = #tpu.pipeline_mode<synchronous>, transform_indices = @transform_2, window_bounds = array<i64: 128, 128>}, {pipeline_mode = #tpu.pipeline_mode<synchronous>, transform_indices = @transform_3, window_bounds = array<i64: 1, 128>}, {pipeline_mode = #tpu.pipeline_mode<synchronous>, transform_indices = @transform_4, window_bounds = array<i64: 128, 128>}, {pipeline_mode = #tpu.pipeline_mode<synchronous>, transform_indices = @transform_5, window_bounds = array<i64: 1, 128>}, {transform_indices = @transform_6, window_bounds = array<i64: 1, 8, 128>}, {transform_indices = @transform_7, window_bounds = array<i64: 1, 1, 8>}]} {
    %c0 = arith.constant 0 : index
    %c0_0 = arith.constant 0 : index
    %c0_1 = arith.constant 0 : index
    %0 = vector.load %arg1[%c0, %c0_0, %c0_1] : memref<1x8x8xi8, #tpu.memory_space<vmem>>, vector<1x8x8xi8>
    %c0_i8 = arith.constant 0 : i8
    %1 = vector.broadcast %c0_i8 : i8 to vector<1x8x8xi8>
    %2 = arith.cmpi ne, %0, %1 : vector<1x8x8xi8>
    %3 = arith.extui %2 : vector<1x8x8xi1> to vector<1x8x8xi32>
    %4 = arith.sitofp %3 : vector<1x8x8xi32> to vector<1x8x8xf32>
    %cst = arith.constant dense<0.000000e+00> : vector<1x8xf32>
    %5 = vector.multi_reduction <add>, %4, %cst [2] : vector<1x8x8xf32> to vector<1x8xf32>
    %cst_2 = arith.constant dense<0.000000e+00> : vector<1x8xf32>
    %6 = vector.multi_reduction <add>, %4, %cst_2 [1] : vector<1x8x8xf32> to vector<1x8xf32>
    %7 = arith.addf %5, %6 : vector<1x8xf32>
    %cst_3 = arith.constant 0.000000e+00 : f32
    %8 = vector.broadcast %cst_3 : f32 to vector<1x8xf32>
    %9 = arith.cmpf oeq, %7, %8 : vector<1x8xf32>
    %10 = arith.extui %9 : vector<1x8xi1> to vector<1x8xi32>
    %11 = arith.sitofp %10 : vector<1x8xi32> to vector<1x8xf32>
    %12 = vector.shape_cast %11 : vector<1x8xf32> to vector<1x1x8xf32>
    %c0_4 = arith.constant 0 : index
    %c0_5 = arith.constant 0 : index
    %c0_6 = arith.constant 0 : index
    %13 = vector.load %arg8[%c0_4, %c0_5, %c0_6] : memref<1x1x8xf32, #tpu.memory_space<vmem>>, vector<1x1x8xf32>
    tpu.vector_store %arg8[%c0_4, %c0_5, %c0_6], %12 {strides = array<i32>} : memref<1x1x8xf32, #tpu.memory_space<vmem>>, vector<1x1x8xf32>,
    %c0_7 = arith.constant 0 : index
    %c0_8 = arith.constant 0 : index
    %c0_9 = arith.constant 0 : index
    %14 = vector.load %arg2[%c0_7, %c0_8, %c0_9] : memref<1x8x128xf32, #tpu.memory_space<vmem>>, vector<1x8x128xf32>
    %cst_10 = arith.constant 1.000000e+00 : f32
    %15 = vector.broadcast %cst_10 : f32 to vector<1x8xf32>
    %16 = arith.addf %5, %15 : vector<1x8xf32>
    %cst_11 = arith.constant 1.000000e+00 : f32
    %17 = vector.broadcast %cst_11 : f32 to vector<1x8xf32>
    %18 = arith.divf %17, %16 : vector<1x8xf32>
    %19 = vector.shape_cast %18 : vector<1x8xf32> to vector<1x8x1xf32>
    %20 = vector.shape_cast %19 : vector<1x8x1xf32> to vector<1x8x1xf32>
    %21 = vector.broadcast %20 : vector<1x8x1xf32> to vector<1x8x128xf32>
    %c0_12 = arith.constant 0 : index
    %c0_13 = arith.constant 0 : index
    %22 = vector.load %arg3[%c0_12, %c0_13] : memref<128x128xf32, #tpu.memory_space<vmem>>, vector<128x128xf32>
    %c0_14 = arith.constant 0 : index
    %c0_15 = arith.constant 0 : index
    %23 = vector.load %arg4[%c0_14, %c0_15] : memref<1x128xf32, #tpu.memory_space<vmem>>, vector<1x128xf32>
    %cst_16 = arith.constant 2.000000e+00 : f32
    %24 = vector.broadcast %cst_16 : f32 to vector<1x128xf32>
    %25 = arith.mulf %24, %23 : vector<1x128xf32>
    %26 = vector.shape_cast %14 : vector<1x8x128xf32> to vector<8x128xf32>
    %cst_17 = arith.constant dense<0.000000e+00> : vector<8x128xf32>
    %27 = tpu.matmul %26, %22, %cst_17 {dimension_numbers = #tpu.dot_dimension_numbers<[1], [0], [0], [1], [0, 0, 1, 1], [], []>} : vector<8x128xf32>, vector<128x128xf32>, vector<8x128xf32> -> vector<8x128xf32>
    %28 = vector.shape_cast %27 : vector<8x128xf32> to vector<1x8x128xf32>
    "tpu.trace_start"() <{level = 10 : i32, message = "bij,bjd->bid"}> : () -> ()
    %cst_18 = arith.constant dense<0.000000e+00> : vector<1x8x128xf32>
    %29 = tpu.matmul %4, %28, %cst_18 {dimension_numbers = #tpu.dot_dimension_numbers<[2], [1], [1], [2], [0, 0, 0, 1, 1, 2], [0], [0]>} : vector<1x8x8xf32>, vector<1x8x128xf32>, vector<1x8x128xf32> -> vector<1x8x128xf32>
    "tpu.trace_stop"() : () -> ()
    %30 = arith.addf %29, %28 : vector<1x8x128xf32>
    %31 = vector.shape_cast %25 : vector<1x128xf32> to vector<1x1x128xf32>
    %32 = vector.broadcast %31 : vector<1x1x128xf32> to vector<1x8x128xf32>
    %33 = arith.addf %30, %32 : vector<1x8x128xf32>
    %34 = arith.mulf %33, %21 : vector<1x8x128xf32>
    %cst_19 = arith.constant 0.000000e+00 : f32
    %35 = vector.broadcast %cst_19 : f32 to vector<1x8x128xf32>
    %36 = arith.maximumf %34, %35 : vector<1x8x128xf32>
    %c0_20 = arith.constant 0 : index
    %c0_21 = arith.constant 0 : index
    %37 = vector.load %arg5[%c0_20, %c0_21] : memref<128x128xf32, #tpu.memory_space<vmem>>, vector<128x128xf32>
    %c0_22 = arith.constant 0 : index
    %c0_23 = arith.constant 0 : index
    %38 = vector.load %arg6[%c0_22, %c0_23] : memref<1x128xf32, #tpu.memory_space<vmem>>, vector<1x128xf32>
    %cst_24 = arith.constant 2.000000e+00 : f32
    %39 = vector.broadcast %cst_24 : f32 to vector<1x128xf32>
    %40 = arith.mulf %39, %38 : vector<1x128xf32>
    %41 = vector.shape_cast %36 : vector<1x8x128xf32> to vector<8x128xf32>
    %cst_25 = arith.constant dense<0.000000e+00> : vector<8x128xf32>
    %42 = tpu.matmul %41, %37, %cst_25 {dimension_numbers = #tpu.dot_dimension_numbers<[1], [0], [0], [1], [0, 0, 1, 1], [], []>} : vector<8x128xf32>, vector<128x128xf32>, vector<8x128xf32> -> vector<8x128xf32>
    %43 = vector.shape_cast %42 : vector<8x128xf32> to vector<1x8x128xf32>
    "tpu.trace_start"() <{level = 10 : i32, message = "bij,bjd->bid"}> : () -> ()
    %cst_26 = arith.constant dense<0.000000e+00> : vector<1x8x128xf32>
    %44 = tpu.matmul %4, %43, %cst_26 {dimension_numbers = #tpu.dot_dimension_numbers<[2], [1], [1], [2], [0, 0, 0, 1, 1, 2], [0], [0]>} : vector<1x8x8xf32>, vector<1x8x128xf32>, vector<1x8x128xf32> -> vector<1x8x128xf32>
    "tpu.trace_stop"() : () -> ()
    %45 = arith.addf %44, %43 : vector<1x8x128xf32>
    %46 = vector.shape_cast %40 : vector<1x128xf32> to vector<1x1x128xf32>
    %47 = vector.broadcast %46 : vector<1x1x128xf32> to vector<1x8x128xf32>
    %48 = arith.addf %45, %47 : vector<1x8x128xf32>
    %49 = arith.mulf %48, %21 : vector<1x8x128xf32>
    %cst_27 = arith.constant 0.000000e+00 : f32
    %50 = vector.broadcast %cst_27 : f32 to vector<1x8x128xf32>
    %51 = arith.maximumf %49, %50 : vector<1x8x128xf32>
    %c0_28 = arith.constant 0 : index
    %c0_29 = arith.constant 0 : index
    %c0_30 = arith.constant 0 : index
    %52 = vector.load %arg7[%c0_28, %c0_29, %c0_30] : memref<1x8x128xf32, #tpu.memory_space<vmem>>, vector<1x8x128xf32>
    tpu.vector_store %arg7[%c0_28, %c0_29, %c0_30], %51 {strides = array<i32>} : memref<1x8x128xf32, #tpu.memory_space<vmem>>, vector<1x8x128xf32>,
    return
  }
  func.func @transform_0(%arg0: i32) -> (i32, i32, i32) {
    %c0_i32 = arith.constant 0 : i32
    %c0_i32_0 = arith.constant 0 : i32
    %c0_i32_1 = arith.constant 0 : i32
    return %arg0, %c0_i32, %c0_i32_0 : i32, i32, i32
  }
  func.func @transform_1(%arg0: i32) -> (i32, i32, i32) {
    %c0_i32 = arith.constant 0 : i32
    %c0_i32_0 = arith.constant 0 : i32
    %c0_i32_1 = arith.constant 0 : i32
    return %arg0, %c0_i32, %c0_i32_0 : i32, i32, i32
  }
  func.func @transform_2(%arg0: i32) -> (i32, i32) {
    %c0_i32 = arith.constant 0 : i32
    %c0_i32_0 = arith.constant 0 : i32
    %c0_i32_1 = arith.constant 0 : i32
    return %c0_i32, %c0_i32_0 : i32, i32
  }
  func.func @transform_3(%arg0: i32) -> (i32, i32) {
    %c0_i32 = arith.constant 0 : i32
    %c0_i32_0 = arith.constant 0 : i32
    %c0_i32_1 = arith.constant 0 : i32
    return %c0_i32, %c0_i32_0 : i32, i32
  }
  func.func @transform_4(%arg0: i32) -> (i32, i32) {
    %c0_i32 = arith.constant 0 : i32
    %c0_i32_0 = arith.constant 0 : i32
    %c0_i32_1 = arith.constant 0 : i32
    return %c0_i32, %c0_i32_0 : i32, i32
  }
  func.func @transform_5(%arg0: i32) -> (i32, i32) {
    %c0_i32 = arith.constant 0 : i32
    %c0_i32_0 = arith.constant 0 : i32
    %c0_i32_1 = arith.constant 0 : i32
    return %c0_i32, %c0_i32_0 : i32, i32
  }
  func.func @transform_6(%arg0: i32) -> (i32, i32, i32) {
    %c0_i32 = arith.constant 0 : i32
    %c0_i32_0 = arith.constant 0 : i32
    %c0_i32_1 = arith.constant 0 : i32
    return %arg0, %c0_i32, %c0_i32_0 : i32, i32, i32
  }
  func.func @transform_7(%arg0: i32) -> (i32, i32, i32) {
    %c0_i32 = arith.constant 0 : i32
    %c0_i32_0 = arith.constant 0 : i32
    %c0_i32_1 = arith.constant 0 : i32
    return %arg0, %c0_i32, %c0_i32_0 : i32, i32, i32
  }
}

</mosaic_0001>

<llo_original>
// kernel: tpu_custom_call.1
$region0: #{tpu_custom_call.1}
  #allocation0 [shape = 'u32[]', space=smem, size = 0x4, offset = 0x4, fixed_abs, tag = 'smem constant byte address 0x4 - core index']
  #allocation1 [shape = 'u32[144,128]{1,0:T(1,128)}', space=vmem, size = 0x12000, scoped, tag = 'internal scratch']
  %s0 = inlined_call_operand.hbm [shape: s8[2,8,8], index: 0, kind: input, shape index: {}]
  %s1 = inlined_call_operand.hbm [shape: f32[2,8,128], index: 1, kind: input, shape index: {}]
  %s2 = inlined_call_operand.hbm [shape: f32[128,128], index: 2, kind: input, shape index: {}]
  %s3 = inlined_call_operand.vmem [shape: f32[1,128], index: 3, kind: input, shape index: {}]
  %s4 = inlined_call_operand.hbm [shape: f32[128,128], index: 4, kind: input, shape index: {}]
  %s5 = inlined_call_operand.vmem [shape: f32[1,128], index: 5, kind: input, shape index: {}]
  %s6 = inlined_call_operand.hbm [shape: f32[2,8,128], index: 6, kind: output, shape index: {0}]
  %s7 = inlined_call_operand.hbm [shape: f32[2,1,8], index: 7, kind: output, shape index: {1}]
  %8 = xla_tuple %s6, %s7
  %s9 = sld [smem:[#allocation0]]
  $region81: #{tpu_custom_call.1} parent=0
    _
  %s11 = ssub.s32 1, %s9
  %s12 = scalar_select 0, %s11, %s9
  $region1: #{tpu_custom_call.1} parent=0
    #allocation2 [shape = 'u8[2048]{0}', space=vmem, size = 0x800, scoped, tag = 'input window, operand 0']
    #allocation3 [shape = 's32[2]{0}', space=sflag, size = 0x8, scoped, tag = 'scoped memory for tpu_custom_call.1']
    #allocation4 [shape = 's32[2]{0}', space=sflag, size = 0x8, scoped, tag = 'scoped memory for tpu_custom_call.1']
    #allocation5 [shape = 'u8[8192]{0}', space=vmem, size = 0x2000, scoped, tag = 'input window, operand 1']
    #allocation6 [shape = 's32[2]{0}', space=sflag, size = 0x8, scoped, tag = 'scoped memory for tpu_custom_call.1']
    #allocation7 [shape = 'u8[65536]{0}', space=vmem, size = 0x10000, scoped, tag = 'input window, operand 2, single buffered']
    #allocation8 [shape = 'u8[65536]{0}', space=vmem, size = 0x10000, scoped, tag = 'input window, operand 4, single buffered']
    #allocation9 [shape = 's32[1]{0}', space=sflag, size = 0x4, scoped, tag = 'scoped memory for tpu_custom_call.1']
    #allocation10 [shape = 'u8[8192]{0}', space=vmem, size = 0x2000, scoped, tag = 'output window, operand 0']
    #allocation11 [shape = 'u8[1024]{0}', space=vmem, size = 0x400, scoped, tag = 'output window, operand 1']
    #allocation12 [shape = 's32[2]{0}', space=sflag, size = 0x8, scoped, tag = 'scoped memory for tpu_custom_call.1']
    %13 = vsyncpa [#allocation3], 0
    %s14 = scalar_lea.sflag [#allocation3], 1
    %15 = vsyncpa %s14, 0
    %16 = vsyncpa [#allocation6], 0
    %s17 = scalar_lea.sflag [#allocation6], 1
    %18 = vsyncpa %s17, 0
    %19 = vsyncpa [#allocation9], 0
    %20 = vsyncpa [#allocation4], 0
    %s21 = scalar_lea.sflag [#allocation4], 1
    %22 = vsyncpa %s21, 0
    %23 = vsyncpa [#allocation12], 0
    %s24 = scalar_lea.sflag [#allocation12], 1
    %25 = vsyncpa %s24, 0
    loop: start=0, step=1, limit=4
    $region2: #{tpu_custom_call.1} parent=1 // loop_pre_header
      _
    $region3: #{tpu_custom_call.1} parent=1 // loop_header
      %s27 = sphi 0, %s31
      %p28 = scmp.ge.s32.totalorder %s27, 4
      %s37 = sphi 0, %s39
      %s40 = sphi 0, %s37
      %s41 = sphi 0, %s40
      %s57 = sphi 0, %s41
      %s63 = sphi 0, %s65
      %s66 = sphi 0, %s63
      %s67 = sphi 0, %s66
      %s83 = sphi 0, %s67
      %s87 = sphi 0, %s87
      %s89 = sphi 0, %s87
      %s90 = sphi 0, %s89
      %s104 = sphi 0, %s90
      %s108 = sphi 0, %s108
      %s110 = sphi 0, %s108
      %s111 = sphi 0, %s110
      %s125 = sphi 0, %s111
      %s129 = sphi 0, %s129
      %s131 = sphi 0, %s129
      %s132 = sphi 0, %s131
      %s146 = sphi 0, %s132
      %s150 = sphi 0, %s150
      %s152 = sphi 0, %s150
      %s153 = sphi 0, %s152
      %s167 = sphi 0, %s153
      %s173 = sphi 0, %s175
      %s176 = sphi 0, %s173
      %s177 = sphi 0, %s176
      %s193 = sphi 0, %s177
      %s199 = sphi 0, %s201
      %s202 = sphi 0, %s199
      %s203 = sphi 0, %s202
      %s219 = sphi 0, %s203
    $region4: #{tpu_custom_call.1} parent=1 // loop_header_branch
      %30 = sbr.rel (%p28) target = $region8
    $region5: #{tpu_custom_call.1} parent=1 // loop_body
      %s32 = ssub.s32 %s27, 1
      %s33 = ssub.s32 %s27, 2
      %s34 = sadd.s32 %s27, 1
      %s35 = ssub.s32 %s27, %s34
      %p36 = scmp.eq.s32.totalorder %s35, 0
      %s38 = sadd.s32 %s37, 1
      %s39 = scalar_select %p36, %s37, %s38
      %p42 = pneg %p36
      %p43 = scmp.eq.s32.totalorder %s27, 1
      %p44 = por %p42, %p43
      %p45 = scmp.ne.s32.totalorder %s37, %s40
      %p46 = scmp.eq.s32.totalorder %s27, 0
      %p47 = por %p45, %p46
      %p48 = scmp.ne.s32.totalorder %s37, %s40
      %p49 = scmp.eq.s32.totalorder %s32, 1
      %p50 = por %p48, %p49
      %p51 = scmp.ne.s32.totalorder %s40, %s41
      %p52 = scmp.eq.s32.totalorder %s32, 0
      %p53 = por %p51, %p52
      %p54 = scmp.ne.s32.totalorder %s40, %s41
      %p55 = scmp.eq.s32.totalorder %s33, 1
      %p56 = por %p54, %p55
      %p58 = scmp.ne.s32.totalorder %s41, %s57
      %p59 = scmp.eq.s32.totalorder %s33, 0
      %p60 = por %p58, %p59
      %s61 = ssub.s32 %s27, %s34
      %p62 = scmp.eq.s32.totalorder %s61, 0
      %s64 = sadd.s32 %s63, 1
      %s65 = scalar_select %p62, %s63, %s64
      %p68 = pneg %p62
      %p69 = scmp.eq.s32.totalorder %s27, 1
      %p70 = por %p68, %p69
      %p71 = scmp.ne.s32.totalorder %s63, %s66
      %p72 = scmp.eq.s32.totalorder %s27, 0
      %p73 = por %p71, %p72
      %p74 = scmp.ne.s32.totalorder %s63, %s66
      %p75 = scmp.eq.s32.totalorder %s32, 1
      %p76 = por %p74, %p75
      %p77 = scmp.ne.s32.totalorder %s66, %s67
      %p78 = scmp.eq.s32.totalorder %s32, 0
      %p79 = por %p77, %p78
      %p80 = scmp.ne.s32.totalorder %s66, %s67
      %p81 = scmp.eq.s32.totalorder %s33, 1
      %p82 = por %p80, %p81
      %p84 = scmp.ne.s32.totalorder %s67, %s83
      %p85 = scmp.eq.s32.totalorder %s33, 0
      %p86 = por %p84, %p85
      %s88 = sadd.s32 %s87, 1
      %p91 = scmp.eq.s32.totalorder %s27, 1
      %p92 = scmp.ne.s32.totalorder %s87, %s89
      %p93 = scmp.eq.s32.totalorder %s27, 0
      %p94 = por %p92, %p93
      %p95 = scmp.ne.s32.totalorder %s87, %s89
      %p96 = scmp.eq.s32.totalorder %s32, 1
      %p97 = por %p95, %p96
      %p98 = scmp.ne.s32.totalorder %s89, %s90
      %p99 = scmp.eq.s32.totalorder %s32, 0
      %p100 = por %p98, %p99
      %p101 = scmp.ne.s32.totalorder %s89, %s90
      %p102 = scmp.eq.s32.totalorder %s33, 1
      %p103 = por %p101, %p102
      %p105 = scmp.ne.s32.totalorder %s90, %s104
      %p106 = scmp.eq.s32.totalorder %s33, 0
      %p107 = por %p105, %p106
      %s109 = sadd.s32 %s108, 1
      %p112 = scmp.eq.s32.totalorder %s27, 1
      %p113 = scmp.ne.s32.totalorder %s108, %s110
      %p114 = scmp.eq.s32.totalorder %s27, 0
      %p115 = por %p113, %p114
      %p116 = scmp.ne.s32.totalorder %s108, %s110
      %p117 = scmp.eq.s32.totalorder %s32, 1
      %p118 = por %p116, %p117
      %p119 = scmp.ne.s32.totalorder %s110, %s111
      %p120 = scmp.eq.s32.totalorder %s32, 0
      %p121 = por %p119, %p120
      %p122 = scmp.ne.s32.totalorder %s110, %s111
      %p123 = scmp.eq.s32.totalorder %s33, 1
      %p124 = por %p122, %p123
      %p126 = scmp.ne.s32.totalorder %s111, %s125
      %p127 = scmp.eq.s32.totalorder %s33, 0
      %p128 = por %p126, %p127
      %s130 = sadd.s32 %s129, 1
      %p133 = scmp.eq.s32.totalorder %s27, 1
      %p134 = scmp.ne.s32.totalorder %s129, %s131
      %p135 = scmp.eq.s32.totalorder %s27, 0
      %p136 = por %p134, %p135
      %p137 = scmp.ne.s32.totalorder %s129, %s131
      %p138 = scmp.eq.s32.totalorder %s32, 1
      %p139 = por %p137, %p138
      %p140 = scmp.ne.s32.totalorder %s131, %s132
      %p141 = scmp.eq.s32.totalorder %s32, 0
      %p142 = por %p140, %p141
      %p143 = scmp.ne.s32.totalorder %s131, %s132
      %p144 = scmp.eq.s32.totalorder %s33, 1
      %p145 = por %p143, %p144
      %p147 = scmp.ne.s32.totalorder %s132, %s146
      %p148 = scmp.eq.s32.totalorder %s33, 0
      %p149 = por %p147, %p148
      %s151 = sadd.s32 %s150, 1
      %p154 = scmp.eq.s32.totalorder %s27, 1
      %p155 = scmp.ne.s32.totalorder %s150, %s152
      %p156 = scmp.eq.s32.totalorder %s27, 0
      %p157 = por %p155, %p156
      %p158 = scmp.ne.s32.totalorder %s150, %s152
      %p159 = scmp.eq.s32.totalorder %s32, 1
      %p160 = por %p158, %p159
      %p161 = scmp.ne.s32.totalorder %s152, %s153
      %p162 = scmp.eq.s32.totalorder %s32, 0
      %p163 = por %p161, %p162
      %p164 = scmp.ne.s32.totalorder %s152, %s153
      %p165 = scmp.eq.s32.totalorder %s33, 1
      %p166 = por %p164, %p165
      %p168 = scmp.ne.s32.totalorder %s153, %s167
      %p169 = scmp.eq.s32.totalorder %s33, 0
      %p170 = por %p168, %p169
      %s171 = ssub.s32 %s27, %s34
      %p172 = scmp.eq.s32.totalorder %s171, 0
      %s174 = sadd.s32 %s173, 1
      %s175 = scalar_select %p172, %s173, %s174
      %p178 = pneg %p172
      %p179 = scmp.eq.s32.totalorder %s27, 1
      %p180 = por %p178, %p179
      %p181 = scmp.ne.s32.totalorder %s173, %s176
      %p182 = scmp.eq.s32.totalorder %s27, 0
      %p183 = por %p181, %p182
      %p184 = scmp.ne.s32.totalorder %s173, %s176
      %p185 = scmp.eq.s32.totalorder %s32, 1
      %p186 = por %p184, %p185
      %p187 = scmp.ne.s32.totalorder %s176, %s177
      %p188 = scmp.eq.s32.totalorder %s32, 0
      %p189 = por %p187, %p188
      %p190 = scmp.ne.s32.totalorder %s176, %s177
      %p191 = scmp.eq.s32.totalorder %s33, 1
      %p192 = por %p190, %p191
      %p194 = scmp.ne.s32.totalorder %s177, %s193
      %p195 = scmp.eq.s32.totalorder %s33, 0
      %p196 = por %p194, %p195
      %s197 = ssub.s32 %s27, %s34
      %p198 = scmp.eq.s32.totalorder %s197, 0
      %s200 = sadd.s32 %s199, 1
      %s201 = scalar_select %p198, %s199, %s200
      %p204 = pneg %p198
      %p205 = scmp.eq.s32.totalorder %s27, 1
      %p206 = por %p204, %p205
      %p207 = scmp.ne.s32.totalorder %s199, %s202
      %p208 = scmp.eq.s32.totalorder %s27, 0
      %p209 = por %p207, %p208
      %p210 = scmp.ne.s32.totalorder %s199, %s202
      %p211 = scmp.eq.s32.totalorder %s32, 1
      %p212 = por %p210, %p211
      %p213 = scmp.ne.s32.totalorder %s202, %s203
      %p214 = scmp.eq.s32.totalorder %s32, 0
      %p215 = por %p213, %p214
      %p216 = scmp.ne.s32.totalorder %s202, %s203
      %p217 = scmp.eq.s32.totalorder %s33, 1
      %p218 = por %p216, %p217
      %p220 = scmp.ne.s32.totalorder %s203, %s219
      %p221 = scmp.eq.s32.totalorder %s33, 0
      %p222 = por %p220, %p221
      %p223 = scmp.le.s32.totalorder 1, %s27
      %p224 = scmp.lt.s32.totalorder %s27, 3
      %p225 = pnand %p223, %p224
      %p226 = pneg %p225
      // Predicated region
      $region9: #{tpu_custom_call.1} parent=5 // pred_check
        _
      $region10: #{tpu_custom_call.1} parent=5 // pred_check_branch
        %228 = sbr.rel (%p225) target = $region12
      $region11: #{tpu_custom_call.1} parent=5 // pred_region
        %s229 = ssub.s32 %s27, 1
        // Predicated region
        $region13: #{tpu_custom_call.1} parent=11 // pred_check
          %p230 = pneg %p100
        $region14: #{tpu_custom_call.1} parent=11 // pred_check_branch
          %232 = sbr.rel (%p230) target = $region16
        $region15: #{tpu_custom_call.1} parent=11 // pred_region
          %s234 = ssub.s32 2048, 2048
          %235 = vsyncadd [#allocation6], %s234
          %s236 = sshll.u32 [#allocation7], 4
          %s237 = int_to_ptr.vmem [resolvable:$true] %s236
          %242 = dma.hbm_to_vmem [thread:$0]  %s2, 2048, %s237, [#allocation6], 128, 128, 8
        $region16: #{tpu_custom_call.1} parent=11 // pred_fallthru
          _
        // Predicated region
        $region17: #{tpu_custom_call.1} parent=11 // pred_check
          %p243 = pneg %p121
        $region18: #{tpu_custom_call.1} parent=11 // pred_check_branch
          %245 = sbr.rel (%p243) target = $region20
        $region19: #{tpu_custom_call.1} parent=11 // pred_region
          _
        $region20: #{tpu_custom_call.1} parent=11 // pred_fallthru
          _
        // Predicated region
        $region21: #{tpu_custom_call.1} parent=11 // pred_check
          %p246 = pneg %p142
        $region22: #{tpu_custom_call.1} parent=11 // pred_check_branch
          %248 = sbr.rel (%p246) target = $region24
        $region23: #{tpu_custom_call.1} parent=11 // pred_region
          %s250 = ssub.s32 2048, 2048
          %251 = vsyncadd [#allocation9], %s250
          %s252 = sshll.u32 [#allocation8], 4
          %s253 = int_to_ptr.vmem [resolvable:$true] %s252
          %258 = dma.hbm_to_vmem [thread:$0]  %s4, 2048, %s253, [#allocation9], 128, 128, 8
        $region24: #{tpu_custom_call.1} parent=11 // pred_fallthru
          _
        // Predicated region
        $region25: #{tpu_custom_call.1} parent=11 // pred_check
          %p259 = pneg %p163
        $region26: #{tpu_custom_call.1} parent=11 // pred_check_branch
          %261 = sbr.rel (%p259) target = $region28
        $region27: #{tpu_custom_call.1} parent=11 // pred_region
          _
        $region28: #{tpu_custom_call.1} parent=11 // pred_fallthru
          _
      $region12: #{tpu_custom_call.1} parent=5 // pred_fallthru
        _
      %p262 = scmp.lt.s32.totalorder %s27, 2
      // Predicated region
      $region29: #{tpu_custom_call.1} parent=5 // pred_check
        %p263 = pneg %p262
      $region30: #{tpu_custom_call.1} parent=5 // pred_check_branch
        %265 = sbr.rel (%p263) target = $region32
      $region31: #{tpu_custom_call.1} parent=5 // pred_region
        // Predicated region
        $region33: #{tpu_custom_call.1} parent=31 // pred_check
          %p266 = pneg %p47
        $region34: #{tpu_custom_call.1} parent=31 // pred_check_branch
          %268 = sbr.rel (%p266) target = $region36
        $region35: #{tpu_custom_call.1} parent=31 // pred_region
          %s269 = sand.u32 %s37, 1
          %s270 = scalar_lea.sflag [#allocation3], %s269
          %s271 = sand.u32 %s37, 1
          %s272 = smul.addr %s271, 2
          %s273 = scalar_lea.vmem [#allocation2], %s272
          %s275 = ssub.s32 32, 32
          %276 = vsyncadd %s270, %s275
          %s277 = smul.addr %s27, 32
          %s278 = scalar_lea.hbm %s0, %s277
          %s280 = sshll.u32 %s273, 4
          %s281 = int_to_ptr.vmem [resolvable:$true] %s280
          %283 = dma.hbm_to_vmem [thread:$0]  %s278, 32, %s281, %s270
        $region36: #{tpu_custom_call.1} parent=31 // pred_fallthru
          _
        // Predicated region
        $region37: #{tpu_custom_call.1} parent=31 // pred_check
          %p284 = pneg %p73
        $region38: #{tpu_custom_call.1} parent=31 // pred_check_branch
          %286 = sbr.rel (%p284) target = $region40
        $region39: #{tpu_custom_call.1} parent=31 // pred_region
          %s287 = sand.u32 %s27, 1
          %s288 = scalar_lea.sflag [#allocation6], %s287
          %s289 = sand.u32 %s63, 1
          %s290 = smul.addr %s289, 8
          %s291 = scalar_lea.vmem [#allocation5], %s290
          %s293 = ssub.s32 128, 128
          %294 = vsyncadd %s288, %s293
          %s295 = smul.addr %s27, 128
          %s296 = scalar_lea.hbm %s1, %s295
          %s298 = sshll.u32 %s291, 4
          %s299 = int_to_ptr.vmem [resolvable:$true] %s298
          %301 = dma.hbm_to_vmem [thread:$0]  %s296, 128, %s299, %s288
        $region40: #{tpu_custom_call.1} parent=31 // pred_fallthru
          _
      $region32: #{tpu_custom_call.1} parent=5 // pred_fallthru
        _
      %p302 = scmp.le.s32.totalorder 1, %s27
      %p303 = scmp.lt.s32.totalorder %s27, 3
      %p304 = pnand %p302, %p303
      %p305 = pneg %p304
      // Predicated region
      $region41: #{tpu_custom_call.1} parent=5 // pred_check
        _
      $region42: #{tpu_custom_call.1} parent=5 // pred_check_branch
        %307 = sbr.rel (%p304) target = $region44
      $region43: #{tpu_custom_call.1} parent=5 // pred_region
        %s308 = ssub.s32 %s27, 1
        %s309 = sand.u32 %s40, 1
        %s310 = scalar_lea.sflag [#allocation3], %s309
        %s311 = sand.u32 %s40, 1
        %s312 = smul.addr %s311, 2
        %s313 = scalar_lea.vmem [#allocation2], %s312
        // Predicated region
        $region45: #{tpu_custom_call.1} parent=43 // pred_check
          %p314 = pneg %p53
        $region46: #{tpu_custom_call.1} parent=43 // pred_check_branch
          %316 = sbr.rel (%p314) target = $region48
        $region47: #{tpu_custom_call.1} parent=43 // pred_region
          %317 = dma.done %s310, 32
        $region48: #{tpu_custom_call.1} parent=43 // pred_fallthru
          _
        %s318 = sand.u32 %s32, 1
        %s319 = scalar_lea.sflag [#allocation6], %s318
        %s320 = sand.u32 %s66, 1
        %s321 = smul.addr %s320, 8
        %s322 = scalar_lea.vmem [#allocation5], %s321
        // Predicated region
        $region49: #{tpu_custom_call.1} parent=43 // pred_check
          %p323 = pneg %p79
        $region50: #{tpu_custom_call.1} parent=43 // pred_check_branch
          %325 = sbr.rel (%p323) target = $region52
        $region51: #{tpu_custom_call.1} parent=43 // pred_region
          %326 = dma.done %s319, 128
        $region52: #{tpu_custom_call.1} parent=43 // pred_fallthru
          _
        // Predicated region
        $region53: #{tpu_custom_call.1} parent=43 // pred_check
          %p327 = pneg %p100
        $region54: #{tpu_custom_call.1} parent=43 // pred_check_branch
          %329 = sbr.rel (%p327) target = $region56
        $region55: #{tpu_custom_call.1} parent=43 // pred_region
          %330 = dma.done [#allocation6], 2048
        $region56: #{tpu_custom_call.1} parent=43 // pred_fallthru
          _
        // Predicated region
        $region57: #{tpu_custom_call.1} parent=43 // pred_check
          %p331 = pneg %p142
        $region58: #{tpu_custom_call.1} parent=43 // pred_check_branch
          %333 = sbr.rel (%p331) target = $region60
        $region59: #{tpu_custom_call.1} parent=43 // pred_region
          %334 = dma.done [#allocation9], 2048
        $region60: #{tpu_custom_call.1} parent=43 // pred_fallthru
          _
        %s335 = sand.u32 %s40, 1
        %s336 = scalar_lea.sflag [#allocation3], %s335
        %s337 = sand.u32 %s40, 1
        %s338 = smul.addr %s337, 2
        %s339 = scalar_lea.vmem [#allocation2], %s338
        %p340 = pneg %p53
        %p341 = pneg %p50
        %s342 = sand.u32 %s32, 1
        %s343 = scalar_lea.sflag [#allocation6], %s342
        %s344 = sand.u32 %s66, 1
        %s345 = smul.addr %s344, 8
        %s346 = scalar_lea.vmem [#allocation5], %s345
        %p347 = pneg %p79
        %p348 = pneg %p76
        %p349 = pneg %p100
        %p350 = pneg %p97
        %p351 = pneg %p121
        %p352 = pneg %p118
        %p353 = pneg %p142
        %p354 = pneg %p139
        %p355 = pneg %p163
        %p356 = pneg %p160
        %p357 = pneg %p189
        %p358 = pneg %p186
        %s359 = sand.u32 %s176, 1
        %s360 = scalar_lea.sflag [#allocation4], %s359
        %s361 = sand.u32 %s176, 1
        %s362 = smul.addr %s361, 8
        %s363 = scalar_lea.vmem [#allocation10], %s362
        %p364 = pneg %p215
        %p365 = pneg %p212
        %s366 = sand.u32 %s202, 1
        %s367 = scalar_lea.sflag [#allocation12], %s366
        %s368 = sand.u32 %s202, 1
        %s369 = scalar_lea.vmem [#allocation11], %s368
        %v372 = vld [vmem:[%s313] sm:$0x3]
        %vm373 = vnez %v372
        %v374 = vsel %vm373, 16843009, 0
        %v375 = vunpack.c.0.s8 %v374
        %vm376 = vcmp.ne.s32.totalorder %v375, 0
        %v377 = vsel %vm376, 1, 0
        %v378 = vcvt.s32.f32 %v377
        %vm379 = vcmask 64512
        %v380 = vsel %vm379, %v378, 0.0
        %381 = vadd.xlane.f32.xlu0 %v380
        %v382 = vpop.xlane.xlu0 %381
        %v383 = vrot.slane %v380, 4
        %v384 = vadd.f32 %v380, %v383
        %v385 = vrot.slane %v384, 2
        %v386 = vadd.f32 %v384, %v385
        %v387 = vrot.slane %v386, 1
        %v388 = vadd.f32 %v386, %v387
        %391 = vbcast.lane.b32.xlu0 %v388, 256
        %v392 = vpop.permute.xlu0 %391
        %v394 = vadd.f32 %v382, %v392
        %vm395 = vcmp.eq.f32.partialorder %v394, 0.0
        %v396 = vsel %vm395, 1, 0
        %v397 = vcvt.s32.f32 %v396
        %399 = vset.pattern.permute.xlu0 0
        %400 = vperm.xlu0 %399, %v397
        %v401 = vpop.permute.xlu0 %400
        %v402 = vlaneseq
        %v403 = vand.u32 %v402, 127
        %v404 = vlaneseq
        %v405 = vshrl.u32 %v404, 7
        %v406 = vsub.s32 %v403, %v405
        %v407 = vrot.slane %v401, %v406
        %vm409 = vcmask 57344
        %410 = vst.msk [vmem:[%s369] sm:$0x1] %vm409, %v407
        %v411 = vld [vmem:[%s322] sm:$0xff]
        %v412 = vadd.f32 %v382, 1.0
        %v413 = vrcp.pop %v412
        %v414 = vmul.f32 1.0, %v413
        %v415 = vld [vmem:[#allocation7] sm:$0xff]
        %v416 = vld [vmem:[#allocation7 + $0x8] sm:$0xff]
        %v417 = vld [vmem:[#allocation7 + $0x10] sm:$0xff]
        %v418 = vld [vmem:[#allocation7 + $0x18] sm:$0xff]
        %v419 = vld [vmem:[#allocation7 + $0x20] sm:$0xff]
        %v420 = vld [vmem:[#allocation7 + $0x28] sm:$0xff]
        %v421 = vld [vmem:[#allocation7 + $0x30] sm:$0xff]
        %v422 = vld [vmem:[#allocation7 + $0x38] sm:$0xff]
        %v423 = vld [vmem:[#allocation7 + $0x40] sm:$0xff]
        %v424 = vld [vmem:[#allocation7 + $0x48] sm:$0xff]
        %v425 = vld [vmem:[#allocation7 + $0x50] sm:$0xff]
        %v426 = vld [vmem:[#allocation7 + $0x58] sm:$0xff]
        %v427 = vld [vmem:[#allocation7 + $0x60] sm:$0xff]
        %v428 = vld [vmem:[#allocation7 + $0x68] sm:$0xff]
        %v429 = vld [vmem:[#allocation7 + $0x70] sm:$0xff]
        %v430 = vld [vmem:[#allocation7 + $0x78] sm:$0xff]
        %v431 = vld [vmem:[%s3] sm:$0x1]
        %v432 = vmul.f32 %v431, 2.0
        %433 = vmatprep.subr.mxu0 0.0
        %434 = vmatpush1.msra.mxu0 %v415
        %435 = vmatprep.subr.mxu0 0.0
        %436 = vmatpush1.msra.mxu0 %v416
        %437 = vmatprep.subr.mxu0 0.0
        %438 = vmatpush1.msra.mxu0 %v417
        %439 = vmatprep.subr.mxu0 0.0
        %440 = vmatpush1.msra.mxu0 %v418
        %441 = vmatprep.subr.mxu0 0.0
        %442 = vmatpush1.msra.mxu0 %v419
        %443 = vmatprep.subr.mxu0 0.0
        %444 = vmatpush1.msra.mxu0 %v420
        %445 = vmatprep.subr.mxu0 0.0
        %446 = vmatpush1.msra.mxu0 %v421
        %447 = vmatprep.subr.mxu0 0.0
        %448 = vmatpush1.msra.mxu0 %v422
        %449 = vmatprep.subr.mxu0 0.0
        %450 = vmatpush1.msra.mxu0 %v423
        %451 = vmatprep.subr.mxu0 0.0
        %452 = vmatpush1.msra.mxu0 %v424
        %453 = vmatprep.subr.mxu0 0.0
        %454 = vmatpush1.msra.mxu0 %v425
        %455 = vmatprep.subr.mxu0 0.0
        %456 = vmatpush1.msra.mxu0 %v426
        %457 = vmatprep.subr.mxu0 0.0
        %458 = vmatpush1.msra.mxu0 %v427
        %459 = vmatprep.subr.mxu0 0.0
        %460 = vmatpush1.msra.mxu0 %v428
        %461 = vmatprep.subr.mxu0 0.0
        %462 = vmatpush1.msra.mxu0 %v429
        %463 = vmatprep.subr.mxu0 0.0
        %464 = vmatpush1.msra.mxu0 %v430
        %465 = vmatprep.subr.mxu0 0.0
        %466 = vmatpush1.msra.mxu0 0.0
        %467 = vmatprep.subr.mxu0 0.0
        %468 = vmatpush1.msra.mxu0 0.0
        %469 = vmatprep.subr.mxu0 0.0
        %470 = vmatpush1.msra.mxu0 0.0
        %471 = vmatprep.subr.mxu0 0.0
        %472 = vmatpush1.msra.mxu0 0.0
        %473 = vmatprep.subr.mxu0 0.0
        %474 = vmatpush1.msra.mxu0 0.0
        %475 = vmatprep.subr.mxu0 0.0
        %476 = vmatpush1.msra.mxu0 0.0
        %477 = vmatprep.subr.mxu0 0.0
        %478 = vmatpush1.msra.mxu0 0.0
        %479 = vmatprep.subr.mxu0 0.0
        %480 = vmatpush1.msra.mxu0 0.0
        %481 = vmatprep.subr.mxu0 0.0
        %482 = vmatpush1.msra.mxu0 0.0
        %483 = vmatprep.subr.mxu0 0.0
        %484 = vmatpush1.msra.mxu0 0.0
        %485 = vmatprep.subr.mxu0 0.0
        %486 = vmatpush1.msra.mxu0 0.0
        %487 = vmatprep.subr.mxu0 0.0
        %488 = vmatpush1.msra.mxu0 0.0
        %489 = vmatprep.subr.mxu0 0.0
        %490 = vmatpush1.msra.mxu0 0.0
        %491 = vmatprep.subr.mxu0 0.0
        %492 = vmatpush1.msra.mxu0 0.0
        %493 = vmatprep.subr.mxu0 0.0
        %494 = vmatpush1.msra.mxu0 0.0
        %495 = vmatprep.subr.mxu0 0.0
        %496 = vmatpush1.msra.mxu0 0.0
        %497 = vmatprep.mubr.f32.mxu0 0.0
        %498 = vmatmul.mubr.f32.gmra.mrb[0].mxu0 %v411
        %v499 = vpop.f32.mrb[0].mxu0
        %v500 = vadd.f32 0.0, %v499
        %v501 = vpop.f32.mrb[0].mxu0
        %502 = vdwg.mxu0
        %v504 = vsel %vm379, %v378, 0
        %506 = vmatprep.subr.mxu0 0.0
        %507 = vmatpush1.msra.mxu0 %v500
        %508 = vmatprep.subr.mxu0 0.0
        %509 = vmatpush1.msra.mxu0 0.0
        %510 = vmatprep.subr.mxu0 0.0
        %511 = vmatpush1.msra.mxu0 0.0
        %512 = vmatprep.subr.mxu0 0.0
        %513 = vmatpush1.msra.mxu0 0.0
        %514 = vmatprep.subr.mxu0 0.0
        %515 = vmatpush1.msra.mxu0 0.0
        %516 = vmatprep.subr.mxu0 0.0
        %517 = vmatpush1.msra.mxu0 0.0
        %518 = vmatprep.subr.mxu0 0.0
        %519 = vmatpush1.msra.mxu0 0.0
        %520 = vmatprep.subr.mxu0 0.0
        %521 = vmatpush1.msra.mxu0 0.0
        %522 = vmatprep.subr.mxu0 0.0
        %523 = vmatpush1.msra.mxu0 0.0
        %524 = vmatprep.subr.mxu0 0.0
        %525 = vmatpush1.msra.mxu0 0.0
        %526 = vmatprep.subr.mxu0 0.0
        %527 = vmatpush1.msra.mxu0 0.0
        %528 = vmatprep.subr.mxu0 0.0
        %529 = vmatpush1.msra.mxu0 0.0
        %530 = vmatprep.subr.mxu0 0.0
        %531 = vmatpush1.msra.mxu0 0.0
        %532 = vmatprep.subr.mxu0 0.0
        %533 = vmatpush1.msra.mxu0 0.0
        %534 = vmatprep.subr.mxu0 0.0
        %535 = vmatpush1.msra.mxu0 0.0
        %536 = vmatprep.subr.mxu0 0.0
        %537 = vmatpush1.msra.mxu0 0.0
        %538 = vmatprep.subr.mxu0 0.0
        %539 = vmatpush1.msra.mxu0 0.0
        %540 = vmatprep.subr.mxu0 0.0
        %541 = vmatpush1.msra.mxu0 0.0
        %542 = vmatprep.subr.mxu0 0.0
        %543 = vmatpush1.msra.mxu0 0.0
        %544 = vmatprep.subr.mxu0 0.0
        %545 = vmatpush1.msra.mxu0 0.0
        %546 = vmatprep.subr.mxu0 0.0
        %547 = vmatpush1.msra.mxu0 0.0
        %548 = vmatprep.subr.mxu0 0.0
        %549 = vmatpush1.msra.mxu0 0.0
        %550 = vmatprep.subr.mxu0 0.0
        %551 = vmatpush1.msra.mxu0 0.0
        %552 = vmatprep.subr.mxu0 0.0
        %553 = vmatpush1.msra.mxu0 0.0
        %554 = vmatprep.subr.mxu0 0.0
        %555 = vmatpush1.msra.mxu0 0.0
        %556 = vmatprep.subr.mxu0 0.0
        %557 = vmatpush1.msra.mxu0 0.0
        %558 = vmatprep.subr.mxu0 0.0
        %559 = vmatpush1.msra.mxu0 0.0
        %560 = vmatprep.subr.mxu0 0.0
        %561 = vmatpush1.msra.mxu0 0.0
        %562 = vmatprep.subr.mxu0 0.0
        %563 = vmatpush1.msra.mxu0 0.0
        %564 = vmatprep.subr.mxu0 0.0
        %565 = vmatpush1.msra.mxu0 0.0
        %566 = vmatprep.subr.mxu0 0.0
        %567 = vmatpush1.msra.mxu0 0.0
        %568 = vmatprep.subr.mxu0 0.0
        %569 = vmatpush1.msra.mxu0 0.0
        %570 = vmatprep.mubr.f32.mxu0 0.0
        %571 = vmatmul.mubr.f32.gmra.mrb[0].mxu0 %v504
        %v572 = vpop.f32.mrb[0].mxu0
        %v573 = vadd.f32 %v500, %v572
        %v574 = vpop.f32.mrb[0].mxu0
        %575 = vdwg.mxu0
        %v577 = vlaneseq
        %v578 = vshrl.u32 %v577, 7
        %v579 = vsub.s32 0, %v578
        %v580 = vrot.slane %v432, %v579
        %v582 = vadd.f32 %v573, %v580
        %v583 = vmul.f32 %v582, %v414
        %v584 = vmax.f32 %v583, 0.0
        %v585 = vld [vmem:[#allocation8] sm:$0xff]
        %v586 = vld [vmem:[#allocation8 + $0x8] sm:$0xff]
        %v587 = vld [vmem:[#allocation8 + $0x10] sm:$0xff]
        %v588 = vld [vmem:[#allocation8 + $0x18] sm:$0xff]
        %v589 = vld [vmem:[#allocation8 + $0x20] sm:$0xff]
        %v590 = vld [vmem:[#allocation8 + $0x28] sm:$0xff]
        %v591 = vld [vmem:[#allocation8 + $0x30] sm:$0xff]
        %v592 = vld [vmem:[#allocation8 + $0x38] sm:$0xff]
        %v593 = vld [vmem:[#allocation8 + $0x40] sm:$0xff]
        %v594 = vld [vmem:[#allocation8 + $0x48] sm:$0xff]
        %v595 = vld [vmem:[#allocation8 + $0x50] sm:$0xff]
        %v596 = vld [vmem:[#allocation8 + $0x58] sm:$0xff]
        %v597 = vld [vmem:[#allocation8 + $0x60] sm:$0xff]
        %v598 = vld [vmem:[#allocation8 + $0x68] sm:$0xff]
        %v599 = vld [vmem:[#allocation8 + $0x70] sm:$0xff]
        %v600 = vld [vmem:[#allocation8 + $0x78] sm:$0xff]
        %v601 = vld [vmem:[%s5] sm:$0x1]
        %v602 = vmul.f32 %v601, 2.0
        %603 = vmatprep.subr.mxu0 0.0
        %604 = vmatpush1.msra.mxu0 %v585
        %605 = vmatprep.subr.mxu0 0.0
        %606 = vmatpush1.msra.mxu0 %v586
        %607 = vmatprep.subr.mxu0 0.0
        %608 = vmatpush1.msra.mxu0 %v587
        %609 = vmatprep.subr.mxu0 0.0
        %610 = vmatpush1.msra.mxu0 %v588
        %611 = vmatprep.subr.mxu0 0.0
        %612 = vmatpush1.msra.mxu0 %v589
        %613 = vmatprep.subr.mxu0 0.0
        %614 = vmatpush1.msra.mxu0 %v590
        %615 = vmatprep.subr.mxu0 0.0
        %616 = vmatpush1.msra.mxu0 %v591
        %617 = vmatprep.subr.mxu0 0.0
        %618 = vmatpush1.msra.mxu0 %v592
        %619 = vmatprep.subr.mxu0 0.0
        %620 = vmatpush1.msra.mxu0 %v593
        %621 = vmatprep.subr.mxu0 0.0
        %622 = vmatpush1.msra.mxu0 %v594
        %623 = vmatprep.subr.mxu0 0.0
        %624 = vmatpush1.msra.mxu0 %v595
        %625 = vmatprep.subr.mxu0 0.0
        %626 = vmatpush1.msra.mxu0 %v596
        %627 = vmatprep.subr.mxu0 0.0
        %628 = vmatpush1.msra.mxu0 %v597
        %629 = vmatprep.subr.mxu0 0.0
        %630 = vmatpush1.msra.mxu0 %v598
        %631 = vmatprep.subr.mxu0 0.0
        %632 = vmatpush1.msra.mxu0 %v599
        %633 = vmatprep.subr.mxu0 0.0
        %634 = vmatpush1.msra.mxu0 %v600
        %635 = vmatprep.subr.mxu0 0.0
        %636 = vmatpush1.msra.mxu0 0.0
        %637 = vmatprep.subr.mxu0 0.0
        %638 = vmatpush1.msra.mxu0 0.0
        %639 = vmatprep.subr.mxu0 0.0
        %640 = vmatpush1.msra.mxu0 0.0
        %641 = vmatprep.subr.mxu0 0.0
        %642 = vmatpush1.msra.mxu0 0.0
        %643 = vmatprep.subr.mxu0 0.0
        %644 = vmatpush1.msra.mxu0 0.0
        %645 = vmatprep.subr.mxu0 0.0
        %646 = vmatpush1.msra.mxu0 0.0
        %647 = vmatprep.subr.mxu0 0.0
        %648 = vmatpush1.msra.mxu0 0.0
        %649 = vmatprep.subr.mxu0 0.0
        %650 = vmatpush1.msra.mxu0 0.0
        %651 = vmatprep.subr.mxu0 0.0
        %652 = vmatpush1.msra.mxu0 0.0
        %653 = vmatprep.subr.mxu0 0.0
        %654 = vmatpush1.msra.mxu0 0.0
        %655 = vmatprep.subr.mxu0 0.0
        %656 = vmatpush1.msra.mxu0 0.0
        %657 = vmatprep.subr.mxu0 0.0
        %658 = vmatpush1.msra.mxu0 0.0
        %659 = vmatprep.subr.mxu0 0.0
        %660 = vmatpush1.msra.mxu0 0.0
        %661 = vmatprep.subr.mxu0 0.0
        %662 = vmatpush1.msra.mxu0 0.0
        %663 = vmatprep.subr.mxu0 0.0
        %664 = vmatpush1.msra.mxu0 0.0
        %665 = vmatprep.subr.mxu0 0.0
        %666 = vmatpush1.msra.mxu0 0.0
        %667 = vmatprep.mubr.f32.mxu0 0.0
        %668 = vmatmul.mubr.f32.gmra.mrb[0].mxu0 %v584
        %v669 = vpop.f32.mrb[0].mxu0
        %v670 = vadd.f32 0.0, %v669
        %v671 = vpop.f32.mrb[0].mxu0
        %672 = vdwg.mxu0
        %673 = vmatprep.subr.mxu0 0.0
        %674 = vmatpush1.msra.mxu0 %v670
        %675 = vmatprep.subr.mxu0 0.0
        %676 = vmatpush1.msra.mxu0 0.0
        %677 = vmatprep.subr.mxu0 0.0
        %678 = vmatpush1.msra.mxu0 0.0
        %679 = vmatprep.subr.mxu0 0.0
        %680 = vmatpush1.msra.mxu0 0.0
        %681 = vmatprep.subr.mxu0 0.0
        %682 = vmatpush1.msra.mxu0 0.0
        %683 = vmatprep.subr.mxu0 0.0
        %684 = vmatpush1.msra.mxu0 0.0
        %685 = vmatprep.subr.mxu0 0.0
        %686 = vmatpush1.msra.mxu0 0.0
        %687 = vmatprep.subr.mxu0 0.0
        %688 = vmatpush1.msra.mxu0 0.0
        %689 = vmatprep.subr.mxu0 0.0
        %690 = vmatpush1.msra.mxu0 0.0
        %691 = vmatprep.subr.mxu0 0.0
        %692 = vmatpush1.msra.mxu0 0.0
        %693 = vmatprep.subr.mxu0 0.0
        %694 = vmatpush1.msra.mxu0 0.0
        %695 = vmatprep.subr.mxu0 0.0
        %696 = vmatpush1.msra.mxu0 0.0
        %697 = vmatprep.subr.mxu0 0.0
        %698 = vmatpush1.msra.mxu0 0.0
        %699 = vmatprep.subr.mxu0 0.0
        %700 = vmatpush1.msra.mxu0 0.0
        %701 = vmatprep.subr.mxu0 0.0
        %702 = vmatpush1.msra.mxu0 0.0
        %703 = vmatprep.subr.mxu0 0.0
        %704 = vmatpush1.msra.mxu0 0.0
        %705 = vmatprep.subr.mxu0 0.0
        %706 = vmatpush1.msra.mxu0 0.0
        %707 = vmatprep.subr.mxu0 0.0
        %708 = vmatpush1.msra.mxu0 0.0
        %709 = vmatprep.subr.mxu0 0.0
        %710 = vmatpush1.msra.mxu0 0.0
        %711 = vmatprep.subr.mxu0 0.0
        %712 = vmatpush1.msra.mxu0 0.0
        %713 = vmatprep.subr.mxu0 0.0
        %714 = vmatpush1.msra.mxu0 0.0
        %715 = vmatprep.subr.mxu0 0.0
        %716 = vmatpush1.msra.mxu0 0.0
        %717 = vmatprep.subr.mxu0 0.0
        %718 = vmatpush1.msra.mxu0 0.0
        %719 = vmatprep.subr.mxu0 0.0
        %720 = vmatpush1.msra.mxu0 0.0
        %721 = vmatprep.subr.mxu0 0.0
        %722 = vmatpush1.msra.mxu0 0.0
        %723 = vmatprep.subr.mxu0 0.0
        %724 = vmatpush1.msra.mxu0 0.0
        %725 = vmatprep.subr.mxu0 0.0
        %726 = vmatpush1.msra.mxu0 0.0
        %727 = vmatprep.subr.mxu0 0.0
        %728 = vmatpush1.msra.mxu0 0.0
        %729 = vmatprep.subr.mxu0 0.0
        %730 = vmatpush1.msra.mxu0 0.0
        %731 = vmatprep.subr.mxu0 0.0
        %732 = vmatpush1.msra.mxu0 0.0
        %733 = vmatprep.subr.mxu0 0.0
        %734 = vmatpush1.msra.mxu0 0.0
        %735 = vmatprep.subr.mxu0 0.0
        %736 = vmatpush1.msra.mxu0 0.0
        %737 = vmatprep.mubr.f32.mxu0 0.0
        %738 = vmatmul.mubr.f32.gmra.mrb[0].mxu0 %v504
        %v739 = vpop.f32.mrb[0].mxu0
        %v740 = vadd.f32 %v670, %v739
        %v741 = vpop.f32.mrb[0].mxu0
        %742 = vdwg.mxu0
        %v744 = vlaneseq
        %v745 = vshrl.u32 %v744, 7
        %v746 = vsub.s32 0, %v745
        %v747 = vrot.slane %v602, %v746
        %v749 = vadd.f32 %v740, %v747
        %v750 = vmul.f32 %v749, %v414
        %v751 = vmax.f32 %v750, 0.0
        %752 = vst [vmem:[%s363] sm:$0xff] %v751
        %s753 = sand.u32 %s176, 1
        %s754 = scalar_lea.sflag [#allocation4], %s753
        %s755 = sand.u32 %s176, 1
        %s756 = smul.addr %s755, 8
        %s757 = scalar_lea.vmem [#allocation10], %s756
        %s758 = sand.u32 %s202, 1
        %s759 = scalar_lea.sflag [#allocation12], %s758
        %s760 = sand.u32 %s202, 1
        %s761 = scalar_lea.vmem [#allocation11], %s760
        // Predicated region
        $region61: #{tpu_custom_call.1} parent=43 // pred_check
          %p762 = pneg %p186
        $region62: #{tpu_custom_call.1} parent=43 // pred_check_branch
          %764 = sbr.rel (%p762) target = $region64
        $region63: #{tpu_custom_call.1} parent=43 // pred_region
          %s766 = ssub.s32 128, 128
          %767 = vsyncadd %s754, %s766
          %s768 = smul.addr %s32, 128
          %s769 = scalar_lea.hbm %s6, %s768
          %s771 = sshll.u32 %s757, 4
          %s772 = int_to_ptr.vmem [resolvable:$true] %s771
          %774 = dma.vmem_to_hbm [thread:$0]  %s772, 128, %s769, %s754
        $region64: #{tpu_custom_call.1} parent=43 // pred_fallthru
          _
        // Predicated region
        $region65: #{tpu_custom_call.1} parent=43 // pred_check
          %p775 = pneg %p212
        $region66: #{tpu_custom_call.1} parent=43 // pred_check_branch
          %777 = sbr.rel (%p775) target = $region68
        $region67: #{tpu_custom_call.1} parent=43 // pred_region
          %s779 = ssub.s32 16, 16
          %780 = vsyncadd %s759, %s779
          %s781 = smul.addr %s32, 16
          %s782 = scalar_lea.hbm %s7, %s781
          %s784 = sshll.u32 %s761, 4
          %s785 = int_to_ptr.vmem [resolvable:$true] %s784
          %787 = dma.vmem_to_hbm [thread:$0]  %s785, 16, %s782, %s759
        $region68: #{tpu_custom_call.1} parent=43 // pred_fallthru
          _
      $region44: #{tpu_custom_call.1} parent=5 // pred_fallthru
        _
      %p788 = scmp.le.s32.totalorder 2, %s27
      // Predicated region
      $region69: #{tpu_custom_call.1} parent=5 // pred_check
        %p789 = pneg %p788
      $region70: #{tpu_custom_call.1} parent=5 // pred_check_branch
        %791 = sbr.rel (%p789) target = $region72
      $region71: #{tpu_custom_call.1} parent=5 // pred_region
        %s792 = ssub.s32 %s27, 2
        // Predicated region
        $region73: #{tpu_custom_call.1} parent=71 // pred_check
          %p793 = pneg %p192
        $region74: #{tpu_custom_call.1} parent=71 // pred_check_branch
          %795 = sbr.rel (%p793) target = $region76
        $region75: #{tpu_custom_call.1} parent=71 // pred_region
          %s796 = sand.u32 %s177, 1
          %s797 = scalar_lea.sflag [#allocation4], %s796
          %s798 = sand.u32 %s177, 1
          %s799 = smul.addr %s798, 8
          %s800 = scalar_lea.vmem [#allocation10], %s799
          %801 = dma.done %s797, 128
        $region76: #{tpu_custom_call.1} parent=71 // pred_fallthru
          _
        // Predicated region
        $region77: #{tpu_custom_call.1} parent=71 // pred_check
          %p802 = pneg %p218
        $region78: #{tpu_custom_call.1} parent=71 // pred_check_branch
          %804 = sbr.rel (%p802) target = $region80
        $region79: #{tpu_custom_call.1} parent=71 // pred_region
          %s805 = sand.u32 %s203, 1
          %s806 = scalar_lea.sflag [#allocation12], %s805
          %s807 = sand.u32 %s203, 1
          %s808 = scalar_lea.vmem [#allocation11], %s807
          %809 = dma.done %s806, 16
        $region80: #{tpu_custom_call.1} parent=71 // pred_fallthru
          _
      $region72: #{tpu_custom_call.1} parent=5 // pred_fallthru
        _
    $region6: #{tpu_custom_call.1} parent=1 // loop_footer
      %s31 = sadd.s32 1, %s27
    $region7: #{tpu_custom_call.1} parent=1 // loop_footer_branch
      %26 = sbr.rel target = $region3
    $region8: #{tpu_custom_call.1} parent=1 // loop_exit
      _
    %810 = vsyncpa [#allocation3], 1
    %s811 = scalar_lea.sflag [#allocation3], 1
    %812 = vsyncpa %s811, 1
    %813 = vsyncpa [#allocation6], 1
    %s814 = scalar_lea.sflag [#allocation6], 1
    %815 = vsyncpa %s814, 1
    %816 = vsyncpa [#allocation9], 1
    %817 = vsyncpa [#allocation4], 1
    %s818 = scalar_lea.sflag [#allocation4], 1
    %819 = vsyncpa %s818, 1
    %820 = vsyncpa [#allocation12], 1
    %s821 = scalar_lea.sflag [#allocation12], 1
    %822 = vsyncpa %s821, 1

</llo_original>
